<compile_context>
chip_gen: v5e
topology: v5e:2x2
jax: 0.10.0
libtpu: 0.0.40
codegen_flags: <defaults>
</compile_context>

<pallas_src>
import functools

import jax
import jax.numpy as jnp
from jax.experimental import pallas as pl
from jax.experimental.pallas import tpu as pltpu


def _round_up(x, m):
    return ((x + m - 1) // m) * m


def _pick_tile_m(requested, n_tokens, K, D, vmem_limit_bytes):
    """Lane-aligned token-tile size, clamped to the per-image token count and
    to a rough VMEM model of the kernel's live (K, tile_m) temporaries."""
    n128 = _round_up(n_tokens, 128)
    tm = 1024 if requested is None else _round_up(int(requested), 128)
    tm = max(128, min(tm, n128))

    bpe = 4

    def est(t):
        xio = 2 * 2 * D * t * bpe                    # double-buffered x-in + xq-out tiles
        idx_b = 2 * 1 * t * bpe                      # double-buffered idx-out tile
        resident = 2 * (K * D + D * K + K) * bpe     # double-buffered codebook operands
        live = 5 * K * t * bpe                       # dist / iota / select / onehot temps
        return xio + idx_b + resident + live

    budget = (vmem_limit_bytes * 3) // 4             # keep headroom for the compiler
    while tm > 128 and est(tm) > budget:
        tm = max(128, _round_up(tm // 2, 128))
    return tm


def _vq_kernel(x_ref, ncb_ref, cbt_ref, c2_ref, xq_ref, idx_ref, loss_ref, *,
               valid_n, tile_m, num_tiles, proxy_sse):
    """One (batch b, token-tile i) grid step; tokens live on the lane axis.

    x_ref:   (D, tile_m)  input tokens (channel-major slab of one image)
    ncb_ref: (K, D)       -2 * codebook   (resident; f32 or bf16)
    cbt_ref: (D, K)       codebook^T      (resident; f32 for exact gather)
    c2_ref:  (K, 1)       ||codebook||^2  (resident; f32)
    xq_ref:  (D, tile_m)  quantized tokens
    idx_ref: (1, tile_m)  code indices (lane-dense int32)
    loss_ref:(8, 128)     per-tile SSE partial (scalar broadcast into one
                          aligned block; wrapper reads [0, 0])
    """
    x = x_ref[...]
    ncb = ncb_ref[...]                                 # (K, D), already -2-scaled
    cbt = cbt_ref[...]                                 # (D, K)
    c2 = c2_ref[...]                                   # (K, 1)
    K = ncb.shape[0]

    xf = x.astype(jnp.float32)

    # dist*[k, t] = ||cb_k||^2 - 2 cb_k . x_t   (||x_t||^2 dropped: argmin-invariant)
    score = jnp.dot(ncb, x.astype(ncb.dtype), preferred_element_type=jnp.float32)
    dist = score + c2                                  # (K, tm), single VPU add

    # argmin over the codebook (sublane) axis, first occurrence on ties.
    # Mosaic has no fused variadic (value, index) min-reduce, and a packed
    # 32-bit key would lose distance precision, so keep min + masked-iota min.
    min_d = jnp.min(dist, axis=0, keepdims=True)                   # (1, tm)
    k_iota = jax.lax.broadcasted_iota(jnp.int32, dist.shape, 0)    # (K, tm)
    idx = jnp.min(jnp.where(dist == min_d, k_iota, K),
                  axis=0, keepdims=True)                           # (1, tm)
    idx_ref[...] = idx

    # Gather the selected codebook rows with a one-hot matmul (MXU); kept in
    # f32 so x_q is exactly the codebook rows.
    onehot = (k_iota == idx).astype(jnp.float32)                   # (K, tm)
    xq = jnp.dot(cbt, onehot, preferred_element_type=jnp.float32)  # (D, tm)
    xq_ref[...] = xq.astype(xq_ref.dtype)

    # Per-token squared error for the commitment loss.
    if proxy_sse:
        # ||x - cb*||^2 = ||x||^2 + (||cb*||^2 - 2 x.cb*) = ||x||^2 + min_d
        # (reuses min_d; avoids re-materialising a (D, tile_m) diff).
        x2 = jnp.sum(xf * xf, axis=0, keepdims=True)               # (1, tm)
        tok = jnp.maximum(x2 + min_d, 0.0)                         # (1, tm)
    else:
        # bf16-score path: min_d carries bf16 rounding, recompute exactly.
        diff = xq - xf
        tok = jnp.sum(diff * diff, axis=0, keepdims=True)          # (1, tm)

    loss_ref[...] = jnp.full((8, 128), jnp.sum(tok), dtype=jnp.float32)

    if valid_n % tile_m != 0:
        # Only the last token tile of each image has padded columns; gate the
        # (1, tile_m) mask so it never runs on interior tiles.
        @pl.when(pl.program_id(1) == num_tiles - 1)
        def _():
            col = (num_tiles - 1) * tile_m + jax.lax.broadcasted_iota(
                jnp.int32, (1, tile_m), 1)
            masked = jnp.where(col < valid_n, tok, 0.0)
            loss_ref[...] = jnp.full((8, 128), jnp.sum(masked), dtype=jnp.float32)


@functools.partial(jax.jit,
                   static_argnames=("beta", "tile_m", "use_bf16_matmul"))
def vector_quantize2_forward(x, codebook_weight, beta=0.25, tile_m=None,
                             use_bf16_matmul=None):
    """Forward pass of VectorQuantize2 (accept_image_fmap=True, no mask).

    x:               (B, C, H, W)  NCHW feature map
    codebook_weight: (K + 1, D)    VQEmbedding weight (last row = padding idx)
    Returns (x_q (B,C,H,W), loss, (None, None, x_code (B,H,W) int32)).
    """
    B, C, H, W = x.shape
    D = C
    K = codebook_weight.shape[0] - 1
    assert codebook_weight.shape[1] == D
    N = H * W

    # bf16 score matmul only in the MXU-bound regime (v6e/v7x); it trades a
    # few near-tie argmin flips for ~3x MXU throughput.  Keep False on v5e.
    if use_bf16_matmul is None:
        use_bf16_matmul = (D >= 64 and K >= 1024)

    # Generation-aware VMEM budget: ~48 MiB on v7x (64 MiB phys), ~96 MiB on
    # v5e/v6e (128 MiB phys).
    try:
        phys_vmem = int(pltpu.get_tpu_info().vmem_capacity_bytes)
    except Exception:
        phys_vmem = 64 * 1024 * 1024
    vmem_limit = int(min((phys_vmem * 3) // 4, 96 * 1024 * 1024))

    tile_m_eff = _pick_tile_m(tile_m, N, K, D, vmem_limit)
    N_pad = _round_up(N, tile_m_eff)
    num_tiles = N_pad // tile_m_eff

    # Hoisted, done ONCE (not per grid step): drop padding row, fold the -2
    # distance scale into the codebook, transpose, squared norms.
    cb = codebook_weight[:-1].astype(jnp.float32)            # (K, D)
    cb_t = cb.T                                              # (D, K)
    c2 = jnp.sum(cb * cb, axis=1, keepdims=True)             # (K, 1)
    neg2cb = -2.0 * cb                                       # (K, D)
    if use_bf16_matmul:
        neg2cb = neg2cb.astype(jnp.bfloat16)

    # Free view: b c h w -> b c (h w).  No transpose; the (batch, token-tile)
    # grid + squeezed batch dim in the BlockSpecs do the token-tiling.
    x3 = x.reshape(B, D, N)
    if N_pad != N:
        x3 = jnp.pad(x3, ((0, 0), (0, 0), (0, N_pad - N)))

    kernel = functools.partial(
        _vq_kernel, valid_n=N, tile_m=tile_m_eff, num_tiles=num_tiles,
        proxy_sse=not use_bf16_matmul)

    xq3, idx3, loss_parts = pl.pallas_call(
        kernel,
        out_shape=(
            jax.ShapeDtypeStruct((B, D, N_pad), x.dtype),
            jax.ShapeDtypeStruct((B, 1, N_pad), jnp.int32),
            jax.ShapeDtypeStruct((B, num_tiles, 8, 128), jnp.float32),
        ),
        grid_spec=pltpu.PrefetchScalarGridSpec(
            num_scalar_prefetch=0,
            grid=(B, num_tiles),
            in_specs=[
                pl.BlockSpec((None, D, tile_m_eff), lambda b, i: (b, 0, i)),
                pl.BlockSpec((K, D), lambda b, i: (0, 0)),     # -2*codebook
                pl.BlockSpec((D, K), lambda b, i: (0, 0)),     # codebook^T
                pl.BlockSpec((K, 1), lambda b, i: (0, 0)),     # ||codebook||^2
            ],
            out_specs=[
                pl.BlockSpec((None, D, tile_m_eff), lambda b, i: (b, 0, i)),
                pl.BlockSpec((None, 1, tile_m_eff), lambda b, i: (b, 0, i)),
                pl.BlockSpec((None, None, 8, 128), lambda b, i: (b, i, 0, 0)),
            ],
        ),
        compiler_params=pltpu.CompilerParams(
            # No cross-step accumulator -> fully parallel / megacore-shardable.
            dimension_semantics=("parallel", "parallel"),
            vmem_limit_bytes=vmem_limit,
        ),
    )(x3, neg2cb, cb_t, c2)

    if N_pad != N:
        xq3 = xq3[:, :, :N]
        idx3 = idx3[:, :, :N]

    # loss = beta*mean((xq.detach()-x)^2) + mean((xq-x.detach())^2) = (1+beta)*mse
    sse = jnp.sum(loss_parts[:, :, 0, 0])
    loss = (1.0 + beta) * sse / (B * N * D)

    x_q = xq3.reshape(B, C, H, W)     # straight-through forward value == x_q
    x_code = idx3.reshape(B, H, W)
    return x_q, loss, (None, None, x_code)


if __name__ == "__main__":
    codebook_size = 64
    beta = 0.25

    def run_case(B, C, H, W, tile_m=None):
        key = jax.random.PRNGKey(0)
        kx, kw = jax.random.split(key)
        x = jax.random.normal(kx, (B, C, H, W), dtype=jnp.float32)
        # nn.Embedding(codebook_size+1, dim) with .uniform_(-1/K, 1/K) init
        codebook_weight = jax.random.uniform(
            kw, (codebook_size + 1, C),
            minval=-1.0 / codebook_size, maxval=1.0 / codebook_size,
            dtype=jnp.float32)

        x_q, loss, (_, _, x_code) = vector_quantize2_forward(
            x, codebook_weight, beta=beta, tile_m=tile_m)
        jax.block_until_ready((x_q, loss, x_code))

        # ---- silent correctness checks against a pure-JAX reference ----
        cb = codebook_weight[:-1]
        xt = jnp.transpose(x, (0, 2, 3, 1)).reshape(-1, C)
        dist_ref = jnp.sum((xt[:, None, :] - cb[None, :, :]) ** 2, axis=-1)
        code_ref = jnp.argmin(dist_ref, axis=-1)
        code_k = x_code.reshape(-1)

        assert x_q.shape == (B, C, H, W) and x_code.shape == (B, H, W)
        assert x_code.dtype == jnp.int32
        # The kernel's pick must be a nearest code (tolerate float-rounding
        # ties between the two distance formulations).
        d_min = jnp.min(dist_ref, axis=-1)
        d_pick = jnp.take_along_axis(dist_ref, code_k[:, None], axis=-1)[:, 0]
        assert bool(jnp.all(d_pick <= d_min + 1e-4))
        assert float(jnp.mean((code_k == code_ref).astype(jnp.float32))) > 0.97
        # Quantized output must be (numerically) the gathered codebook rows.
        xq_tok = jnp.transpose(x_q, (0, 2, 3, 1)).reshape(-1, C)
        assert bool(jnp.allclose(xq_tok, cb[code_k], atol=1e-5))
        # Loss check computed from the kernel's own codes.
        loss_chk = (1.0 + beta) * jnp.mean((cb[code_k] - xt) ** 2)
        assert bool(jnp.allclose(loss, loss_chk, rtol=1e-4, atol=1e-5))

    run_case(2, 4, 16, 16, tile_m=128)   # N=256/image: 2 tiles per image, no padding
    run_case(2, 4, 15, 15)               # N=225/image: padded to 256, tail-masked loss

    print("KERNEL_OK")
</pallas_src>

<mosaic_0001>
module attributes {stable_mosaic.version = 11 : i64} {
  func.func @_vq_kernel(%arg0: i32, %arg1: i32, %arg2: memref<1x4x128xf32, #tpu.memory_space<vmem>>, %arg3: memref<64x4xf32, #tpu.memory_space<vmem>>, %arg4: memref<4x64xf32, #tpu.memory_space<vmem>>, %arg5: memref<64x1xf32, #tpu.memory_space<vmem>>, %arg6: memref<1x4x128xf32, #tpu.memory_space<vmem>>, %arg7: memref<1x1x128xi32, #tpu.memory_space<vmem>>, %arg8: memref<1x1x8x128xf32, #tpu.memory_space<vmem>>) attributes {dimension_semantics = [#tpu.dimension_semantics<parallel>, #tpu.dimension_semantics<parallel>], iteration_bounds = array<i64: 2, 2>, scalar_prefetch = 0 : i64, scratch_operands = 0 : i64, tpu.core_type = #tpu.core_type<tc>, window_params = [{transform_indices = @transform_0, window_bounds = array<i64: 1, 4, 128>}, {pipeline_mode = #tpu.pipeline_mode<synchronous>, transform_indices = @transform_1, window_bounds = array<i64: 64, 4>}, {pipeline_mode = #tpu.pipeline_mode<synchronous>, transform_indices = @transform_2, window_bounds = array<i64: 4, 64>}, {pipeline_mode = #tpu.pipeline_mode<synchronous>, transform_indices = @transform_3, window_bounds = array<i64: 64, 1>}, {transform_indices = @transform_4, window_bounds = array<i64: 1, 4, 128>}, {transform_indices = @transform_5, window_bounds = array<i64: 1, 1, 128>}, {transform_indices = @transform_6, window_bounds = array<i64: 1, 1, 8, 128>}]} {
    %c0 = arith.constant 0 : index
    %c0_0 = arith.constant 0 : index
    %c0_1 = arith.constant 0 : index
    %0 = vector.load %arg2[%c0, %c0_0, %c0_1] : memref<1x4x128xf32, #tpu.memory_space<vmem>>, vector<1x4x128xf32>
    %1 = vector.shape_cast %0 : vector<1x4x128xf32> to vector<4x128xf32>
    %c0_2 = arith.constant 0 : index
    %c0_3 = arith.constant 0 : index
    %2 = vector.load %arg3[%c0_2, %c0_3] : memref<64x4xf32, #tpu.memory_space<vmem>>, vector<64x4xf32>
    %c0_4 = arith.constant 0 : index
    %c0_5 = arith.constant 0 : index
    %3 = vector.load %arg4[%c0_4, %c0_5] : memref<4x64xf32, #tpu.memory_space<vmem>>, vector<4x64xf32>
    %c0_6 = arith.constant 0 : index
    %c0_7 = arith.constant 0 : index
    %4 = vector.load %arg5[%c0_6, %c0_7] : memref<64x1xf32, #tpu.memory_space<vmem>>, vector<64x1xf32>
    %cst = arith.constant dense<0.000000e+00> : vector<64x128xf32>
    %5 = tpu.matmul %2, %1, %cst {dimension_numbers = #tpu.dot_dimension_numbers<[1], [0], [0], [1], [0, 0, 1, 1], [], []>} : vector<64x4xf32>, vector<4x128xf32>, vector<64x128xf32> -> vector<64x128xf32>
    %6 = vector.broadcast %4 : vector<64x1xf32> to vector<64x128xf32>
    %7 = arith.addf %5, %6 : vector<64x128xf32>
    %cst_8 = arith.constant dense<0x7F800000> : vector<128xf32>
    %8 = vector.multi_reduction <minimumf>, %7, %cst_8 [0] : vector<64x128xf32> to vector<128xf32>
    %9 = vector.shape_cast %8 : vector<128xf32> to vector<1x128xf32>
    %10 = tpu.iota {dimensions = array<i32: 0>} : vector<64x128xi32>
    %11 = vector.broadcast %9 : vector<1x128xf32> to vector<64x128xf32>
    %12 = arith.cmpf oeq, %7, %11 : vector<64x128xf32>
    %c64_i32 = arith.constant 64 : i32
    %13 = vector.broadcast %c64_i32 : i32 to vector<64x128xi32>
    %14 = arith.select %12, %10, %13 : vector<64x128xi1>, vector<64x128xi32>
    %cst_9 = arith.constant dense<2147483647> : vector<128xi32>
    %15 = vector.multi_reduction <minsi>, %14, %cst_9 [0] : vector<64x128xi32> to vector<128xi32>
    %16 = vector.shape_cast %15 : vector<128xi32> to vector<1x128xi32>
    %c0_10 = arith.constant 0 : index
    %c0_11 = arith.constant 0 : index
    %c0_12 = arith.constant 0 : index
    %17 = vector.load %arg7[%c0_10, %c0_11, %c0_12] : memref<1x1x128xi32, #tpu.memory_space<vmem>>, vector<1x1x128xi32>
    %18 = vector.shape_cast %17 : vector<1x1x128xi32> to vector<1x128xi32>
    %19 = vector.shape_cast %16 : vector<1x128xi32> to vector<1x1x128xi32>
    tpu.vector_store %arg7[%c0_10, %c0_11, %c0_12], %19 {strides = array<i32>} : memref<1x1x128xi32, #tpu.memory_space<vmem>>, vector<1x1x128xi32>,
    %20 = vector.broadcast %16 : vector<1x128xi32> to vector<64x128xi32>
    %21 = arith.cmpi eq, %10, %20 : vector<64x128xi32>
    %22 = arith.extui %21 : vector<64x128xi1> to vector<64x128xi32>
    %23 = arith.sitofp %22 : vector<64x128xi32> to vector<64x128xf32>
    %cst_13 = arith.constant dense<0.000000e+00> : vector<4x128xf32>
    %24 = tpu.matmul %3, %23, %cst_13 {dimension_numbers = #tpu.dot_dimension_numbers<[1], [0], [0], [1], [0, 0, 1, 1], [], []>} : vector<4x64xf32>, vector<64x128xf32>, vector<4x128xf32> -> vector<4x128xf32>
    %c0_14 = arith.constant 0 : index
    %c0_15 = arith.constant 0 : index
    %c0_16 = arith.constant 0 : index
    %25 = vector.load %arg6[%c0_14, %c0_15, %c0_16] : memref<1x4x128xf32, #tpu.memory_space<vmem>>, vector<1x4x128xf32>
    %26 = vector.shape_cast %25 : vector<1x4x128xf32> to vector<4x128xf32>
    %27 = vector.shape_cast %24 : vector<4x128xf32> to vector<1x4x128xf32>
    tpu.vector_store %arg6[%c0_14, %c0_15, %c0_16], %27 {strides = array<i32>} : memref<1x4x128xf32, #tpu.memory_space<vmem>>, vector<1x4x128xf32>,
    %28 = arith.mulf %1, %1 : vector<4x128xf32>
    %cst_17 = arith.constant dense<0.000000e+00> : vector<128xf32>
    %29 = vector.multi_reduction <add>, %28, %cst_17 [0] : vector<4x128xf32> to vector<128xf32>
    %30 = vector.shape_cast %29 : vector<128xf32> to vector<1x128xf32>
    %31 = arith.addf %30, %9 : vector<1x128xf32>
    %cst_18 = arith.constant 0.000000e+00 : f32
    %32 = vector.broadcast %cst_18 : f32 to vector<1x128xf32>
    %33 = arith.maximumf %31, %32 : vector<1x128xf32>
    %34 = vector.shape_cast %33 : vector<1x128xf32> to vector<1x1x128xf32>
    %cst_19 = arith.constant dense<0.000000e+00> : vector<1xf32>
    %35 = vector.multi_reduction <add>, %34, %cst_19 [1, 2] : vector<1x1x128xf32> to vector<1xf32>
    %36 = vector.shape_cast %35 : vector<1xf32> to vector<1x1x1xf32>
    %37 = vector.extract %36[0, 0, 0] : f32 from vector<1x1x1xf32>
    %38 = vector.broadcast %37 : f32 to vector<8x128xf32>
    %c0_20 = arith.constant 0 : index
    %c0_21 = arith.constant 0 : index
    %c0_22 = arith.constant 0 : index
    %c0_23 = arith.constant 0 : index
    %39 = vector.load %arg8[%c0_20, %c0_21, %c0_22, %c0_23] : memref<1x1x8x128xf32, #tpu.memory_space<vmem>>, vector<1x1x8x128xf32>
    %40 = vector.shape_cast %39 : vector<1x1x8x128xf32> to vector<8x128xf32>
    %41 = vector.shape_cast %38 : vector<8x128xf32> to vector<1x1x8x128xf32>
    tpu.vector_store %arg8[%c0_20, %c0_21, %c0_22, %c0_23], %41 {strides = array<i32>} : memref<1x1x8x128xf32, #tpu.memory_space<vmem>>, vector<1x1x8x128xf32>,
    return
  }
  func.func @transform_0(%arg0: i32, %arg1: i32) -> (i32, i32, i32) {
    %c0_i32 = arith.constant 0 : i32
    %c0_i32_0 = arith.constant 0 : i32
    return %arg0, %c0_i32, %arg1 : i32, i32, i32
  }
  func.func @transform_1(%arg0: i32, %arg1: i32) -> (i32, i32) {
    %c0_i32 = arith.constant 0 : i32
    %c0_i32_0 = arith.constant 0 : i32
    %c0_i32_1 = arith.constant 0 : i32
    return %c0_i32, %c0_i32_0 : i32, i32
  }
  func.func @transform_2(%arg0: i32, %arg1: i32) -> (i32, i32) {
    %c0_i32 = arith.constant 0 : i32
    %c0_i32_0 = arith.constant 0 : i32
    %c0_i32_1 = arith.constant 0 : i32
    return %c0_i32, %c0_i32_0 : i32, i32
  }
  func.func @transform_3(%arg0: i32, %arg1: i32) -> (i32, i32) {
    %c0_i32 = arith.constant 0 : i32
    %c0_i32_0 = arith.constant 0 : i32
    %c0_i32_1 = arith.constant 0 : i32
    return %c0_i32, %c0_i32_0 : i32, i32
  }
  func.func @transform_4(%arg0: i32, %arg1: i32) -> (i32, i32, i32) {
    %c0_i32 = arith.constant 0 : i32
    %c0_i32_0 = arith.constant 0 : i32
    return %arg0, %c0_i32, %arg1 : i32, i32, i32
  }
  func.func @transform_5(%arg0: i32, %arg1: i32) -> (i32, i32, i32) {
    %c0_i32 = arith.constant 0 : i32
    %c0_i32_0 = arith.constant 0 : i32
    return %arg0, %c0_i32, %arg1 : i32, i32, i32
  }
  func.func @transform_6(%arg0: i32, %arg1: i32) -> (i32, i32, i32, i32) {
    %c0_i32 = arith.constant 0 : i32
    %c0_i32_0 = arith.constant 0 : i32
    %c0_i32_1 = arith.constant 0 : i32
    return %arg0, %arg1, %c0_i32, %c0_i32_0 : i32, i32, i32, i32
  }
}

</mosaic_0001>

<llo_original>
// kernel: vector_quantize2_forward.1
$region0: #{vector_quantize2_forward.1}
  #allocation0 [shape = 'u32[]', space=smem, size = 0x4, offset = 0x4, fixed_abs, tag = 'smem constant byte address 0x4 - core index']
  #allocation1 [shape = 'u32[72,128]{1,0:T(1,128)}', space=vmem, size = 0x9000, scoped, tag = 'internal scratch']
  %s0 = inlined_call_operand.vmem [shape: f32[2,4,256], index: 0, kind: input, shape index: {}]
  %s1 = inlined_call_operand.vmem [shape: f32[64,4], index: 1, kind: input, shape index: {}]
  %s2 = inlined_call_operand.vmem [shape: f32[4,64], index: 2, kind: input, shape index: {}]
  %s3 = inlined_call_operand.vmem [shape: f32[64,1], index: 3, kind: input, shape index: {}]
  %s4 = inlined_call_operand.vmem [shape: f32[2,4,256], index: 4, kind: output, shape index: {0}]
  %s5 = inlined_call_operand.vmem [shape: s32[2,1,256], index: 5, kind: output, shape index: {1}]
  %s6 = inlined_call_operand.vmem [shape: f32[2,2,8,128], index: 6, kind: output, shape index: {2}]
  %7 = xla_tuple %s4, %s5, %s6
  %s8 = sld [smem:[#allocation0]]
  $region65: #{vector_quantize2_forward.1} parent=0
    _
  %s10 = ssub.s32 1, %s8
  %s11 = scalar_select 0, %s10, %s8
  loop: start=0, step=1, limit=6
  $region2: #{vector_quantize2_forward.1} parent=0 // loop_pre_header
    _
  $region3: #{vector_quantize2_forward.1} parent=0 // loop_header
    %s13 = sphi 0, %s17
    %p14 = scmp.ge.s32.totalorder %s13, 6
    %s20 = sphi 0, %s32
    %s21 = sphi 0, %s28
    %s22 = sphi 0, %s20
    %s23 = sphi 0, %s21
    %s24 = sphi 0, %s22
    %s25 = sphi 0, %s23
    %s37 = sphi 0, %s39
    %s40 = sphi 0, %s37
    %s41 = sphi 0, %s40
    %s57 = sphi 0, %s41
    %s61 = sphi 0, %s61
    %s63 = sphi 0, %s61
    %s64 = sphi 0, %s63
    %s78 = sphi 0, %s64
    %s82 = sphi 0, %s82
    %s84 = sphi 0, %s82
    %s85 = sphi 0, %s84
    %s99 = sphi 0, %s85
    %s103 = sphi 0, %s103
    %s105 = sphi 0, %s103
    %s106 = sphi 0, %s105
    %s120 = sphi 0, %s106
    %s128 = sphi 0, %s130
    %s131 = sphi 0, %s128
    %s132 = sphi 0, %s131
    %s148 = sphi 0, %s132
    %s156 = sphi 0, %s158
    %s159 = sphi 0, %s156
    %s160 = sphi 0, %s159
    %s176 = sphi 0, %s160
    %s184 = sphi 0, %s186
    %s187 = sphi 0, %s184
    %s188 = sphi 0, %s187
    %s204 = sphi 0, %s188
  $region4: #{vector_quantize2_forward.1} parent=0 // loop_header_branch
    %16 = sbr.rel (%p14) target = $region8
  $region5: #{vector_quantize2_forward.1} parent=0 // loop_body
    %s18 = ssub.s32 %s13, 1
    %s19 = ssub.s32 %s13, 2
    %s26 = sadd.s32 1, %s21
    %p27 = scmp.ge.s32.totalorder %s26, 2
    %s28 = scalar_select %p27, 0, %s26
    %s29 = sadd.s32 1, %s20
    %s30 = scalar_select %p27, %s29, %s20
    %p31 = scmp.ge.s32.totalorder %s30, 2
    %s32 = scalar_select %p31, 0, %s30
    %s33 = ssub.s32 %s20, %s32
    %s34 = ssub.s32 %s21, %s28
    %s35 = sor.u32 %s33, %s34
    %p36 = scmp.eq.s32.totalorder %s35, 0
    %s38 = sadd.s32 %s37, 1
    %s39 = scalar_select %p36, %s37, %s38
    %p42 = pneg %p36
    %p43 = scmp.eq.s32.totalorder %s13, 3
    %p44 = por %p42, %p43
    %p45 = scmp.ne.s32.totalorder %s37, %s40
    %p46 = scmp.eq.s32.totalorder %s13, 0
    %p47 = por %p45, %p46
    %p48 = scmp.ne.s32.totalorder %s37, %s40
    %p49 = scmp.eq.s32.totalorder %s18, 3
    %p50 = por %p48, %p49
    %p51 = scmp.ne.s32.totalorder %s40, %s41
    %p52 = scmp.eq.s32.totalorder %s18, 0
    %p53 = por %p51, %p52
    %p54 = scmp.ne.s32.totalorder %s40, %s41
    %p55 = scmp.eq.s32.totalorder %s19, 3
    %p56 = por %p54, %p55
    %p58 = scmp.ne.s32.totalorder %s41, %s57
    %p59 = scmp.eq.s32.totalorder %s19, 0
    %p60 = por %p58, %p59
    %s62 = sadd.s32 %s61, 1
    %p65 = scmp.eq.s32.totalorder %s13, 3
    %p66 = scmp.ne.s32.totalorder %s61, %s63
    %p67 = scmp.eq.s32.totalorder %s13, 0
    %p68 = por %p66, %p67
    %p69 = scmp.ne.s32.totalorder %s61, %s63
    %p70 = scmp.eq.s32.totalorder %s18, 3
    %p71 = por %p69, %p70
    %p72 = scmp.ne.s32.totalorder %s63, %s64
    %p73 = scmp.eq.s32.totalorder %s18, 0
    %p74 = por %p72, %p73
    %p75 = scmp.ne.s32.totalorder %s63, %s64
    %p76 = scmp.eq.s32.totalorder %s19, 3
    %p77 = por %p75, %p76
    %p79 = scmp.ne.s32.totalorder %s64, %s78
    %p80 = scmp.eq.s32.totalorder %s19, 0
    %p81 = por %p79, %p80
    %s83 = sadd.s32 %s82, 1
    %p86 = scmp.eq.s32.totalorder %s13, 3
    %p87 = scmp.ne.s32.totalorder %s82, %s84
    %p88 = scmp.eq.s32.totalorder %s13, 0
    %p89 = por %p87, %p88
    %p90 = scmp.ne.s32.totalorder %s82, %s84
    %p91 = scmp.eq.s32.totalorder %s18, 3
    %p92 = por %p90, %p91
    %p93 = scmp.ne.s32.totalorder %s84, %s85
    %p94 = scmp.eq.s32.totalorder %s18, 0
    %p95 = por %p93, %p94
    %p96 = scmp.ne.s32.totalorder %s84, %s85
    %p97 = scmp.eq.s32.totalorder %s19, 3
    %p98 = por %p96, %p97
    %p100 = scmp.ne.s32.totalorder %s85, %s99
    %p101 = scmp.eq.s32.totalorder %s19, 0
    %p102 = por %p100, %p101
    %s104 = sadd.s32 %s103, 1
    %p107 = scmp.eq.s32.totalorder %s13, 3
    %p108 = scmp.ne.s32.totalorder %s103, %s105
    %p109 = scmp.eq.s32.totalorder %s13, 0
    %p110 = por %p108, %p109
    %p111 = scmp.ne.s32.totalorder %s103, %s105
    %p112 = scmp.eq.s32.totalorder %s18, 3
    %p113 = por %p111, %p112
    %p114 = scmp.ne.s32.totalorder %s105, %s106
    %p115 = scmp.eq.s32.totalorder %s18, 0
    %p116 = por %p114, %p115
    %p117 = scmp.ne.s32.totalorder %s105, %s106
    %p118 = scmp.eq.s32.totalorder %s19, 3
    %p119 = por %p117, %p118
    %p121 = scmp.ne.s32.totalorder %s106, %s120
    %p122 = scmp.eq.s32.totalorder %s19, 0
    %p123 = por %p121, %p122
    %s124 = ssub.s32 %s20, %s32
    %s125 = ssub.s32 %s21, %s28
    %s126 = sor.u32 %s124, %s125
    %p127 = scmp.eq.s32.totalorder %s126, 0
    %s129 = sadd.s32 %s128, 1
    %s130 = scalar_select %p127, %s128, %s129
    %p133 = pneg %p127
    %p134 = scmp.eq.s32.totalorder %s13, 3
    %p135 = por %p133, %p134
    %p136 = scmp.ne.s32.totalorder %s128, %s131
    %p137 = scmp.eq.s32.totalorder %s13, 0
    %p138 = por %p136, %p137
    %p139 = scmp.ne.s32.totalorder %s128, %s131
    %p140 = scmp.eq.s32.totalorder %s18, 3
    %p141 = por %p139, %p140
    %p142 = scmp.ne.s32.totalorder %s131, %s132
    %p143 = scmp.eq.s32.totalorder %s18, 0
    %p144 = por %p142, %p143
    %p145 = scmp.ne.s32.totalorder %s131, %s132
    %p146 = scmp.eq.s32.totalorder %s19, 3
    %p147 = por %p145, %p146
    %p149 = scmp.ne.s32.totalorder %s132, %s148
    %p150 = scmp.eq.s32.totalorder %s19, 0
    %p151 = por %p149, %p150
    %s152 = ssub.s32 %s20, %s32
    %s153 = ssub.s32 %s21, %s28
    %s154 = sor.u32 %s152, %s153
    %p155 = scmp.eq.s32.totalorder %s154, 0
    %s157 = sadd.s32 %s156, 1
    %s158 = scalar_select %p155, %s156, %s157
    %p161 = pneg %p155
    %p162 = scmp.eq.s32.totalorder %s13, 3
    %p163 = por %p161, %p162
    %p164 = scmp.ne.s32.totalorder %s156, %s159
    %p165 = scmp.eq.s32.totalorder %s13, 0
    %p166 = por %p164, %p165
    %p167 = scmp.ne.s32.totalorder %s156, %s159
    %p168 = scmp.eq.s32.totalorder %s18, 3
    %p169 = por %p167, %p168
    %p170 = scmp.ne.s32.totalorder %s159, %s160
    %p171 = scmp.eq.s32.totalorder %s18, 0
    %p172 = por %p170, %p171
    %p173 = scmp.ne.s32.totalorder %s159, %s160
    %p174 = scmp.eq.s32.totalorder %s19, 3
    %p175 = por %p173, %p174
    %p177 = scmp.ne.s32.totalorder %s160, %s176
    %p178 = scmp.eq.s32.totalorder %s19, 0
    %p179 = por %p177, %p178
    %s180 = ssub.s32 %s20, %s32
    %s181 = ssub.s32 %s21, %s28
    %s182 = sor.u32 %s180, %s181
    %p183 = scmp.eq.s32.totalorder %s182, 0
    %s185 = sadd.s32 %s184, 1
    %s186 = scalar_select %p183, %s184, %s185
    %p189 = pneg %p183
    %p190 = scmp.eq.s32.totalorder %s13, 3
    %p191 = por %p189, %p190
    %p192 = scmp.ne.s32.totalorder %s184, %s187
    %p193 = scmp.eq.s32.totalorder %s13, 0
    %p194 = por %p192, %p193
    %p195 = scmp.ne.s32.totalorder %s184, %s187
    %p196 = scmp.eq.s32.totalorder %s18, 3
    %p197 = por %p195, %p196
    %p198 = scmp.ne.s32.totalorder %s187, %s188
    %p199 = scmp.eq.s32.totalorder %s18, 0
    %p200 = por %p198, %p199
    %p201 = scmp.ne.s32.totalorder %s187, %s188
    %p202 = scmp.eq.s32.totalorder %s19, 3
    %p203 = por %p201, %p202
    %p205 = scmp.ne.s32.totalorder %s188, %s204
    %p206 = scmp.eq.s32.totalorder %s19, 0
    %p207 = por %p205, %p206
    %p208 = scmp.le.s32.totalorder 1, %s13
    %p209 = scmp.lt.s32.totalorder %s13, 5
    %p210 = pnand %p208, %p209
    %p211 = pneg %p210
    // Predicated region
    $region9: #{vector_quantize2_forward.1} parent=5 // pred_check
      _
    $region10: #{vector_quantize2_forward.1} parent=5 // pred_check_branch
      %213 = sbr.rel (%p210) target = $region12
    $region11: #{vector_quantize2_forward.1} parent=5 // pred_region
      %s214 = ssub.s32 %s13, 1
      // Predicated region
      $region13: #{vector_quantize2_forward.1} parent=11 // pred_check
        %p215 = pneg %p74
      $region14: #{vector_quantize2_forward.1} parent=11 // pred_check_branch
        %217 = sbr.rel (%p215) target = $region16
      $region15: #{vector_quantize2_forward.1} parent=11 // pred_region
        _
      $region16: #{vector_quantize2_forward.1} parent=11 // pred_fallthru
        _
      // Predicated region
      $region17: #{vector_quantize2_forward.1} parent=11 // pred_check
        %p218 = pneg %p95
      $region18: #{vector_quantize2_forward.1} parent=11 // pred_check_branch
        %220 = sbr.rel (%p218) target = $region20
      $region19: #{vector_quantize2_forward.1} parent=11 // pred_region
        _
      $region20: #{vector_quantize2_forward.1} parent=11 // pred_fallthru
        _
      // Predicated region
      $region21: #{vector_quantize2_forward.1} parent=11 // pred_check
        %p221 = pneg %p116
      $region22: #{vector_quantize2_forward.1} parent=11 // pred_check_branch
        %223 = sbr.rel (%p221) target = $region24
      $region23: #{vector_quantize2_forward.1} parent=11 // pred_region
        _
      $region24: #{vector_quantize2_forward.1} parent=11 // pred_fallthru
        _
    $region12: #{vector_quantize2_forward.1} parent=5 // pred_fallthru
      _
    %p224 = scmp.lt.s32.totalorder %s13, 4
    // Predicated region
    $region25: #{vector_quantize2_forward.1} parent=5 // pred_check
      %p225 = pneg %p224
    $region26: #{vector_quantize2_forward.1} parent=5 // pred_check_branch
      %227 = sbr.rel (%p225) target = $region28
    $region27: #{vector_quantize2_forward.1} parent=5 // pred_region
      // Predicated region
      $region29: #{vector_quantize2_forward.1} parent=27 // pred_check
        %p228 = pneg %p47
      $region30: #{vector_quantize2_forward.1} parent=27 // pred_check_branch
        %230 = sbr.rel (%p228) target = $region32
      $region31: #{vector_quantize2_forward.1} parent=27 // pred_region
        %p231 = scmp.lt.s32.totalorder %s20, 1
        %s232 = scalar_select %p231, %s20, 1
        %p233 = scmp.lt.s32.totalorder %s21, 1
        %s234 = scalar_select %p233, %s21, 1
        %s235 = smul.addr %s232, 2
        %s236 = sadd.s32 %s234, %s235
        %s237 = smul.addr %s236, 4
        %s238 = scalar_lea.vmem %s0, %s237
      $region32: #{vector_quantize2_forward.1} parent=27 // pred_fallthru
        _
    $region28: #{vector_quantize2_forward.1} parent=5 // pred_fallthru
      _
    %p239 = scmp.le.s32.totalorder 1, %s13
    %p240 = scmp.lt.s32.totalorder %s13, 5
    %p241 = pnand %p239, %p240
    %p242 = pneg %p241
    // Predicated region
    $region33: #{vector_quantize2_forward.1} parent=5 // pred_check
      _
    $region34: #{vector_quantize2_forward.1} parent=5 // pred_check_branch
      %244 = sbr.rel (%p241) target = $region36
    $region35: #{vector_quantize2_forward.1} parent=5 // pred_region
      %s245 = ssub.s32 %s13, 1
      %p246 = scmp.lt.s32.totalorder %s22, 1
      %s247 = scalar_select %p246, %s22, 1
      %p248 = scmp.lt.s32.totalorder %s23, 1
      %s249 = scalar_select %p248, %s23, 1
      %s250 = smul.addr %s247, 2
      %s251 = sadd.s32 %s249, %s250
      %s252 = smul.addr %s251, 4
      %s253 = scalar_lea.vmem %s0, %s252
      %p254 = pneg %p53
      %p255 = pneg %p50
      %p256 = pneg %p74
      %p257 = pneg %p71
      %p258 = pneg %p95
      %p259 = pneg %p92
      %p260 = pneg %p116
      %p261 = pneg %p113
      %p262 = pneg %p144
      %p263 = pneg %p141
      %p264 = scmp.lt.s32.totalorder %s22, 1
      %s265 = scalar_select %p264, %s22, 1
      %p266 = scmp.lt.s32.totalorder %s23, 1
      %s267 = scalar_select %p266, %s23, 1
      %s268 = smul.addr %s265, 2
      %s269 = sadd.s32 %s267, %s268
      %s270 = smul.addr %s269, 4
      %s271 = scalar_lea.vmem %s4, %s270
      %p272 = pneg %p172
      %p273 = pneg %p169
      %p274 = scmp.lt.s32.totalorder %s22, 1
      %s275 = scalar_select %p274, %s22, 1
      %p276 = scmp.lt.s32.totalorder %s23, 1
      %s277 = scalar_select %p276, %s23, 1
      %s278 = smul.addr %s275, 2
      %s279 = sadd.s32 %s277, %s278
      %s280 = scalar_lea.vmem %s5, %s279
      %p281 = pneg %p200
      %p282 = pneg %p197
      %p283 = scmp.lt.s32.totalorder %s22, 1
      %s284 = scalar_select %p283, %s22, 1
      %p285 = scmp.lt.s32.totalorder %s23, 1
      %s286 = scalar_select %p285, %s23, 1
      %s287 = smul.addr %s284, 2
      %s288 = sadd.s32 %s286, %s287
      %s289 = smul.addr %s288, 8
      %s290 = scalar_lea.vmem %s6, %s289
      %p291 = scmp.lt.s32.totalorder %s22, 1
      %s292 = scalar_select %p291, %s22, 1
      %p293 = scmp.lt.s32.totalorder %s23, 1
      %s294 = scalar_select %p293, %s23, 1
      %s295 = smul.addr %s292, 2
      %s296 = sadd.s32 %s294, %s295
      %s297 = smul.addr %s296, 4
      %s298 = scalar_lea.vmem %s0, %s297
      %p299 = scmp.lt.s32.totalorder %s22, 1
      %s300 = scalar_select %p299, %s22, 1
      %p301 = scmp.lt.s32.totalorder %s23, 1
      %s302 = scalar_select %p301, %s23, 1
      %s303 = smul.addr %s300, 2
      %s304 = sadd.s32 %s302, %s303
      %s305 = smul.addr %s304, 4
      %s306 = scalar_lea.vmem %s4, %s305
      %p307 = scmp.lt.s32.totalorder %s22, 1
      %s308 = scalar_select %p307, %s22, 1
      %p309 = scmp.lt.s32.totalorder %s23, 1
      %s310 = scalar_select %p309, %s23, 1
      %s311 = smul.addr %s308, 2
      %s312 = sadd.s32 %s310, %s311
      %s313 = scalar_lea.vmem %s5, %s312
      %p314 = scmp.lt.s32.totalorder %s22, 1
      %s315 = scalar_select %p314, %s22, 1
      %p316 = scmp.lt.s32.totalorder %s23, 1
      %s317 = scalar_select %p316, %s23, 1
      %s318 = smul.addr %s315, 2
      %s319 = sadd.s32 %s317, %s318
      %s320 = smul.addr %s319, 8
      %s321 = scalar_lea.vmem %s6, %s320
      %v322 = vld [vmem:[%s298] sm:$0xf]
      %v323 = vld [vmem:[%s1] sm:$0xff]
      %v324 = vld [vmem:[%s1 + $0x8] sm:$0xff]
      %v325 = vld [vmem:[%s1 + $0x10] sm:$0xff]
      %v326 = vld [vmem:[%s1 + $0x18] sm:$0xff]
      %v327 = vld [vmem:[%s1 + $0x20] sm:$0xff]
      %v328 = vld [vmem:[%s1 + $0x28] sm:$0xff]
      %v329 = vld [vmem:[%s1 + $0x30] sm:$0xff]
      %v330 = vld [vmem:[%s1 + $0x38] sm:$0xff]
      %v331 = vld [vmem:[%s2] sm:$0xf]
      %v332 = vld [vmem:[%s3] sm:$0xff]
      %v333 = vld [vmem:[%s3 + $0x8] sm:$0xff]
      %v334 = vld [vmem:[%s3 + $0x10] sm:$0xff]
      %v335 = vld [vmem:[%s3 + $0x18] sm:$0xff]
      %v336 = vld [vmem:[%s3 + $0x20] sm:$0xff]
      %v337 = vld [vmem:[%s3 + $0x28] sm:$0xff]
      %v338 = vld [vmem:[%s3 + $0x30] sm:$0xff]
      %v339 = vld [vmem:[%s3 + $0x38] sm:$0xff]
      %341 = vset.pattern.permute.xlu0 0
      %342 = vperm.xlu0 %341, %v332
      %v343 = vpop.permute.xlu0 %342
      %346 = vset.pattern.permute.xlu0 0
      %347 = vperm.xlu0 %346, %v333
      %v348 = vpop.permute.xlu0 %347
      %351 = vset.pattern.permute.xlu0 0
      %352 = vperm.xlu0 %351, %v334
      %v353 = vpop.permute.xlu0 %352
      %356 = vset.pattern.permute.xlu0 0
      %357 = vperm.xlu0 %356, %v335
      %v358 = vpop.permute.xlu0 %357
      %361 = vset.pattern.permute.xlu0 0
      %362 = vperm.xlu0 %361, %v336
      %v363 = vpop.permute.xlu0 %362
      %366 = vset.pattern.permute.xlu0 0
      %367 = vperm.xlu0 %366, %v337
      %v368 = vpop.permute.xlu0 %367
      %371 = vset.pattern.permute.xlu0 0
      %372 = vperm.xlu0 %371, %v338
      %v373 = vpop.permute.xlu0 %372
      %376 = vset.pattern.permute.xlu0 0
      %377 = vperm.xlu0 %376, %v339
      %v378 = vpop.permute.xlu0 %377
      %vm380 = vcmask 31744
      %v382 = vsel %vm380, %v323, 0
      %v385 = vsel %vm380, %v324, 0
      %v388 = vsel %vm380, %v325, 0
      %v391 = vsel %vm380, %v326, 0
      %v394 = vsel %vm380, %v327, 0
      %v397 = vsel %vm380, %v328, 0
      %v400 = vsel %vm380, %v329, 0
      %v403 = vsel %vm380, %v330, 0
      %vm405 = vcmask 1043456
      %v407 = vsel %vm405, %v322, 0
      %409 = vmatpush.msra.mxu0 0.0
      %410 = vmatpush.msra.mxu0 0.0
      %411 = vmatpush.msra.mxu0 0.0
      %412 = vmatpush.msra.mxu0 0.0
      %413 = vmatpush.msra.mxu0 0.0
      %414 = vmatpush.msra.mxu0 0.0
      %415 = vmatpush.msra.mxu0 0.0
      %416 = vmatpush.msra.mxu0 0.0
      %417 = vmatpush.msra.mxu0 0.0
      %418 = vmatpush.msra.mxu0 0.0
      %419 = vmatpush.msra.mxu0 0.0
      %420 = vmatpush.msra.mxu0 0.0
      %421 = vmatpush.msra.mxu0 0.0
      %422 = vmatpush.msra.mxu0 0.0
      %423 = vmatpush.msra.mxu0 0.0
      %424 = vmatpush.msra.mxu0 %v407
      %425 = vmatmul.f32.gmra.mxu0 %v382
      %v426 = vpop.f32.mrf.mxu0
      %v427 = vadd.f32 %v343, %v426
      %428 = vmatmul.f32.gmra.mxu0 %v385
      %v429 = vpop.f32.mrf.mxu0
      %v430 = vadd.f32 %v348, %v429
      %431 = vmatmul.f32.gmra.mxu0 %v388
      %v432 = vpop.f32.mrf.mxu0
      %v433 = vadd.f32 %v353, %v432
      %434 = vmatmul.f32.gmra.mxu0 %v391
      %v435 = vpop.f32.mrf.mxu0
      %v436 = vadd.f32 %v358, %v435
      %437 = vmatmul.f32.gmra.mxu0 %v394
      %v438 = vpop.f32.mrf.mxu0
      %v439 = vadd.f32 %v363, %v438
      %440 = vmatmul.f32.gmra.mxu0 %v397
      %v441 = vpop.f32.mrf.mxu0
      %v442 = vadd.f32 %v368, %v441
      %443 = vmatmul.f32.gmra.mxu0 %v400
      %v444 = vpop.f32.mrf.mxu0
      %v445 = vadd.f32 %v373, %v444
      %446 = vmatmul.f32.gmra.mxu0 %v403
      %v447 = vpop.f32.mrf.mxu0
      %v448 = vadd.f32 %v378, %v447
      %449 = vdwg.mxu0
      %v450 = vmin.f32 %v427, %v439
      %v451 = vmin.f32 %v430, %v442
      %v452 = vmin.f32 %v433, %v445
      %v453 = vmin.f32 %v436, %v448
      %v454 = vmin.f32 %v450, %v451
      %v455 = vmin.f32 %v452, %v453
      %v456 = vmin.f32 %v454, %v455
      %v457 = vrot.slane %v456, 4
      %v458 = vmin.f32 %v456, %v457
      %v459 = vrot.slane %v458, 2
      %v460 = vmin.f32 %v458, %v459
      %v461 = vrot.slane %v460, 1
      %v462 = vmin.f32 %v460, %v461
      %v463 = vlaneseq
      %v464 = vshrl.u32 %v463, 7
      %v465 = vadd.s32 %v464, 8
      %v466 = vadd.s32 %v464, 16
      %v467 = vadd.s32 %v464, 24
      %v468 = vadd.s32 %v464, 32
      %v469 = vadd.s32 %v464, 40
      %v470 = vadd.s32 %v464, 48
      %v471 = vadd.s32 %v464, 56
      %vm472 = vcmp.eq.f32.partialorder %v427, %v462
      %vm473 = vcmp.eq.f32.partialorder %v430, %v462
      %vm474 = vcmp.eq.f32.partialorder %v433, %v462
      %vm475 = vcmp.eq.f32.partialorder %v436, %v462
      %vm476 = vcmp.eq.f32.partialorder %v439, %v462
      %vm477 = vcmp.eq.f32.partialorder %v442, %v462
      %vm478 = vcmp.eq.f32.partialorder %v445, %v462
      %vm479 = vcmp.eq.f32.partialorder %v448, %v462
      %v480 = vsel %vm472, %v464, 64
      %v481 = vsel %vm473, %v465, 64
      %v482 = vsel %vm474, %v466, 64
      %v483 = vsel %vm475, %v467, 64
      %v484 = vsel %vm476, %v468, 64
      %v485 = vsel %vm477, %v469, 64
      %v486 = vsel %vm478, %v470, 64
      %v487 = vsel %vm479, %v471, 64
      %vm488 = vcmp.lt.s32.totalorder %v480, %v484
      %v489 = vsel %vm488, %v480, %v484
      %vm490 = vcmp.lt.s32.totalorder %v481, %v485
      %v491 = vsel %vm490, %v481, %v485
      %vm492 = vcmp.lt.s32.totalorder %v482, %v486
      %v493 = vsel %vm492, %v482, %v486
      %vm494 = vcmp.lt.s32.totalorder %v483, %v487
      %v495 = vsel %vm494, %v483, %v487
      %vm496 = vcmp.lt.s32.totalorder %v489, %v491
      %v497 = vsel %vm496, %v489, %v491
      %vm498 = vcmp.lt.s32.totalorder %v493, %v495
      %v499 = vsel %vm498, %v493, %v495
      %vm500 = vcmp.lt.s32.totalorder %v497, %v499
      %v501 = vsel %vm500, %v497, %v499
      %v502 = vrot.slane %v501, 4
      %vm503 = vcmp.lt.s32.totalorder %v501, %v502
      %v504 = vsel %vm503, %v501, %v502
      %v505 = vrot.slane %v504, 2
      %vm506 = vcmp.lt.s32.totalorder %v504, %v505
      %v507 = vsel %vm506, %v504, %v505
      %v508 = vrot.slane %v507, 1
      %vm509 = vcmp.lt.s32.totalorder %v507, %v508
      %v510 = vsel %vm509, %v507, %v508
      %511 = vst [vmem:[%s313] sm:$0x1] %v510
      %vm512 = vcmp.eq.s32.totalorder %v464, %v510
      %vm513 = vcmp.eq.s32.totalorder %v465, %v510
      %vm514 = vcmp.eq.s32.totalorder %v466, %v510
      %vm515 = vcmp.eq.s32.totalorder %v467, %v510
      %vm516 = vcmp.eq.s32.totalorder %v468, %v510
      %vm517 = vcmp.eq.s32.totalorder %v469, %v510
      %vm518 = vcmp.eq.s32.totalorder %v470, %v510
      %vm519 = vcmp.eq.s32.totalorder %v471, %v510
      %v520 = vsel %vm512, 1, 0
      %v521 = vsel %vm513, 1, 0
      %v522 = vsel %vm514, 1, 0
      %v523 = vsel %vm515, 1, 0
      %v524 = vsel %vm516, 1, 0
      %v525 = vsel %vm517, 1, 0
      %v526 = vsel %vm518, 1, 0
      %v527 = vsel %vm519, 1, 0
      %v528 = vcvt.s32.f32 %v520
      %v529 = vcvt.s32.f32 %v521
      %v530 = vcvt.s32.f32 %v522
      %v531 = vcvt.s32.f32 %v523
      %v532 = vcvt.s32.f32 %v524
      %v533 = vcvt.s32.f32 %v525
      %v534 = vcvt.s32.f32 %v526
      %v535 = vcvt.s32.f32 %v527
      %vm536 = vcmask 523264
      %v538 = vsel %vm536, %v331, 0
      %540 = vmatpush.msra.mxu0 0.0
      %541 = vmatpush.msra.mxu0 0.0
      %542 = vmatpush.msra.mxu0 0.0
      %543 = vmatpush.msra.mxu0 0.0
      %544 = vmatpush.msra.mxu0 0.0
      %545 = vmatpush.msra.mxu0 0.0
      %546 = vmatpush.msra.mxu0 0.0
      %547 = vmatpush.msra.mxu0 0.0
      %548 = vmatpush.msra.mxu0 %v535
      %549 = vmatpush.msra.mxu0 %v534
      %550 = vmatpush.msra.mxu0 %v533
      %551 = vmatpush.msra.mxu0 %v532
      %552 = vmatpush.msra.mxu0 %v531
      %553 = vmatpush.msra.mxu0 %v530
      %554 = vmatpush.msra.mxu0 %v529
      %555 = vmatpush.msra.mxu0 %v528
      %556 = vmatmul.f32.gmra.mxu0 %v538
      %v557 = vpop.f32.mrf.mxu0
      %v558 = vadd.f32 0.0, %v557
      %559 = vdwg.mxu0
      %560 = vst [vmem:[%s306] sm:$0xf] %v558
      %v561 = vmul.f32 %v322, %v322
      %v562 = vsel %vm405, %v561, 0.0
      %v563 = vrot.slane %v562, 4
      %v564 = vadd.f32 %v562, %v563
      %v565 = vrot.slane %v564, 2
      %v566 = vadd.f32 %v564, %v565
      %v567 = vrot.slane %v566, 1
      %v568 = vadd.f32 %v566, %v567
      %v569 = vadd.f32 %v568, %v462
      %v570 = vmax.f32 %v569, 0.0
      %vm571 = vcmask 1040384
      %v572 = vsel %vm571, %v570, 0.0
      %573 = vadd.xlane.f32.xlu0 %v572
      %v574 = vpop.xlane.xlu0 %573
      %v575 = vrot.slane %v574, 4
      %v576 = vadd.f32 %v574, %v575
      %v577 = vrot.slane %v576, 2
      %v578 = vadd.f32 %v576, %v577
      %v579 = vrot.slane %v578, 1
      %v580 = vadd.f32 %v578, %v579
      %s581 = vtos %v580
      %v582 = vstv %s581
      %583 = vst [vmem:[%s321] sm:$0xff] %v582
      %p584 = scmp.lt.s32.totalorder %s22, 1
      %s585 = scalar_select %p584, %s22, 1
      %p586 = scmp.lt.s32.totalorder %s23, 1
      %s587 = scalar_select %p586, %s23, 1
      %s588 = smul.addr %s585, 2
      %s589 = sadd.s32 %s587, %s588
      %s590 = smul.addr %s589, 4
      %s591 = scalar_lea.vmem %s4, %s590
      %p592 = scmp.lt.s32.totalorder %s22, 1
      %s593 = scalar_select %p592, %s22, 1
      %p594 = scmp.lt.s32.totalorder %s23, 1
      %s595 = scalar_select %p594, %s23, 1
      %s596 = smul.addr %s593, 2
      %s597 = sadd.s32 %s595, %s596
      %s598 = scalar_lea.vmem %s5, %s597
      %p599 = scmp.lt.s32.totalorder %s22, 1
      %s600 = scalar_select %p599, %s22, 1
      %p601 = scmp.lt.s32.totalorder %s23, 1
      %s602 = scalar_select %p601, %s23, 1
      %s603 = smul.addr %s600, 2
      %s604 = sadd.s32 %s602, %s603
      %s605 = smul.addr %s604, 8
      %s606 = scalar_lea.vmem %s6, %s605
      // Predicated region
      $region37: #{vector_quantize2_forward.1} parent=35 // pred_check
        %p607 = pneg %p141
      $region38: #{vector_quantize2_forward.1} parent=35 // pred_check_branch
        %609 = sbr.rel (%p607) target = $region40
      $region39: #{vector_quantize2_forward.1} parent=35 // pred_region
        _
      $region40: #{vector_quantize2_forward.1} parent=35 // pred_fallthru
        _
      // Predicated region
      $region41: #{vector_quantize2_forward.1} parent=35 // pred_check
        %p610 = pneg %p169
      $region42: #{vector_quantize2_forward.1} parent=35 // pred_check_branch
        %612 = sbr.rel (%p610) target = $region44
      $region43: #{vector_quantize2_forward.1} parent=35 // pred_region
        _
      $region44: #{vector_quantize2_forward.1} parent=35 // pred_fallthru
        _
      // Predicated region
      $region45: #{vector_quantize2_forward.1} parent=35 // pred_check
        %p613 = pneg %p197
      $region46: #{vector_quantize2_forward.1} parent=35 // pred_check_branch
        %615 = sbr.rel (%p613) target = $region48
      $region47: #{vector_quantize2_forward.1} parent=35 // pred_region
        _
      $region48: #{vector_quantize2_forward.1} parent=35 // pred_fallthru
        _
    $region36: #{vector_quantize2_forward.1} parent=5 // pred_fallthru
      _
    %p616 = scmp.le.s32.totalorder 2, %s13
    // Predicated region
    $region49: #{vector_quantize2_forward.1} parent=5 // pred_check
      %p617 = pneg %p616
    $region50: #{vector_quantize2_forward.1} parent=5 // pred_check_branch
      %619 = sbr.rel (%p617) target = $region52
    $region51: #{vector_quantize2_forward.1} parent=5 // pred_region
      %s620 = ssub.s32 %s13, 2
      // Predicated region
      $region53: #{vector_quantize2_forward.1} parent=51 // pred_check
        %p621 = pneg %p147
      $region54: #{vector_quantize2_forward.1} parent=51 // pred_check_branch
        %623 = sbr.rel (%p621) target = $region56
      $region55: #{vector_quantize2_forward.1} parent=51 // pred_region
        %p624 = scmp.lt.s32.totalorder %s24, 1
        %s625 = scalar_select %p624, %s24, 1
        %p626 = scmp.lt.s32.totalorder %s25, 1
        %s627 = scalar_select %p626, %s25, 1
        %s628 = smul.addr %s625, 2
        %s629 = sadd.s32 %s627, %s628
        %s630 = smul.addr %s629, 4
        %s631 = scalar_lea.vmem %s4, %s630
      $region56: #{vector_quantize2_forward.1} parent=51 // pred_fallthru
        _
      // Predicated region
      $region57: #{vector_quantize2_forward.1} parent=51 // pred_check
        %p632 = pneg %p175
      $region58: #{vector_quantize2_forward.1} parent=51 // pred_check_branch
        %634 = sbr.rel (%p632) target = $region60
      $region59: #{vector_quantize2_forward.1} parent=51 // pred_region
        %p635 = scmp.lt.s32.totalorder %s24, 1
        %s636 = scalar_select %p635, %s24, 1
        %p637 = scmp.lt.s32.totalorder %s25, 1
        %s638 = scalar_select %p637, %s25, 1
        %s639 = smul.addr %s636, 2
        %s640 = sadd.s32 %s638, %s639
        %s641 = scalar_lea.vmem %s5, %s640
      $region60: #{vector_quantize2_forward.1} parent=51 // pred_fallthru
        _
      // Predicated region
      $region61: #{vector_quantize2_forward.1} parent=51 // pred_check
        %p642 = pneg %p203
      $region62: #{vector_quantize2_forward.1} parent=51 // pred_check_branch
        %644 = sbr.rel (%p642) target = $region64
      $region63: #{vector_quantize2_forward.1} parent=51 // pred_region
        %p645 = scmp.lt.s32.totalorder %s24, 1
        %s646 = scalar_select %p645, %s24, 1
        %p647 = scmp.lt.s32.totalorder %s25, 1
        %s648 = scalar_select %p647, %s25, 1
        %s649 = smul.addr %s646, 2
        %s650 = sadd.s32 %s648, %s649
        %s651 = smul.addr %s650, 8
        %s652 = scalar_lea.vmem %s6, %s651
      $region64: #{vector_quantize2_forward.1} parent=51 // pred_fallthru
        _
    $region52: #{vector_quantize2_forward.1} parent=5 // pred_fallthru
      _
  $region6: #{vector_quantize2_forward.1} parent=0 // loop_footer
    %s17 = sadd.s32 1, %s13
  $region7: #{vector_quantize2_forward.1} parent=0 // loop_footer_branch
    %12 = sbr.rel target = $region3
  $region8: #{vector_quantize2_forward.1} parent=0 // loop_exit
    _

</llo_original>
